<compile_context>
chip_gen: v6e
topology: v6e:2x2x1
jax: 0.10.0
libtpu: 0.0.40
codegen_flags: <defaults>
</compile_context>

<pallas_src>
import functools

import jax
import jax.numpy as jnp
from jax.experimental import pallas as pl
from jax.experimental.pallas import tpu as pltpu


def _round_up(v, m):
    return ((v + m - 1) // m) * m


def _pad_to(arr, shape):
    pads = [(0, t - s) for s, t in zip(arr.shape, shape)]
    if any(hi for _, hi in pads):
        arr = jnp.pad(arr, pads)
    return arr


def _choose_tiles(n):
    """Row tile TM and contraction tile TK for the (N, N) adjacency matrix."""
    tm = _round_up(n, 8) if n <= 256 else 256
    # Single contraction tile while the (TM, N) adj block stays small
    # (256 * 2048 * bf16 = 1 MiB per buffer); otherwise tile K at 1024.
    tk = _round_up(n, 8) if n <= 2048 else 1024
    return tm, tk


def _gcn_two_mm_kernel(adj_ref, x_ref, w_ref, b_ref, out_ref, acc_ref):
    """acc += adj_tile @ x_tile; at the last k: out = acc @ W + b."""
    k = pl.program_id(2)

    @pl.when(k == 0)
    def _init():
        acc_ref[...] = jnp.zeros_like(acc_ref)

    acc_ref[...] += jnp.dot(adj_ref[...], x_ref[...],
                            preferred_element_type=jnp.float32)

    @pl.when(k == pl.num_programs(2) - 1)
    def _finalize():
        out = jnp.dot(acc_ref[...], w_ref[...],
                      preferred_element_type=jnp.float32)
        out_ref[...] = (out + b_ref[...]).astype(out_ref.dtype)


def _gcn_one_mm_kernel(adj_ref, xw_ref, b_ref, out_ref, acc_ref):
    """Weight already folded into features: acc += adj_tile @ xw_tile."""
    k = pl.program_id(2)

    @pl.when(k == 0)
    def _init():
        acc_ref[...] = jnp.zeros_like(acc_ref)

    acc_ref[...] += jnp.dot(adj_ref[...], xw_ref[...],
                            preferred_element_type=jnp.float32)

    @pl.when(k == pl.num_programs(2) - 1)
    def _finalize():
        out_ref[...] = (acc_ref[...] + b_ref[...]).astype(out_ref.dtype)


@functools.partial(jax.jit, static_argnames=("stream_dtype",))
def graph_convolution(x, adj, weight, bias=None, *, stream_dtype=jnp.bfloat16):
    """Pallas TPU implementation of GraphConvolution.forward(x, adj)."""
    B, N, Fin = x.shape
    Fout = weight.shape[1]
    assert adj.shape == (B, N, N)
    assert weight.shape == (Fin, Fout)
    out_dtype = x.dtype

    tm, tk = _choose_tiles(N)
    n_m = _round_up(N, tm)            # padded row dim
    n_k = _round_up(N, tk)            # padded contraction dim
    f_out = _round_up(Fout, 128)      # lane-dense output features

    # (adj @ x) @ W == adj @ (x @ W): contract the N x N adjacency against the
    # narrower of Fin / Fout.
    fold_weight = Fout < Fin
    if fold_weight:
        feat = jnp.matmul(x, weight, preferred_element_type=jnp.float32)
        f_feat = f_out                # accumulator directly holds output lanes
    else:
        feat = x
        f_feat = Fin                  # keep the cheap feature stream unpadded

    adj_p = _pad_to(adj, (B, n_m, n_k)).astype(stream_dtype)
    feat_p = _pad_to(feat, (B, n_k, f_feat)).astype(stream_dtype)
    bias_2d = (jnp.zeros((1, Fout), jnp.float32) if bias is None
               else bias.astype(jnp.float32).reshape(1, Fout))
    bias_p = _pad_to(bias_2d, (1, f_out))

    grid = (B, n_m // tm, n_k // tk)

    adj_spec = pl.BlockSpec((None, tm, tk), lambda b, i, k: (b, i, k))
    feat_spec = pl.BlockSpec((None, tk, f_feat), lambda b, i, k: (b, k, 0))
    bias_spec = pl.BlockSpec((1, f_out), lambda b, i, k: (0, 0))
    out_spec = pl.BlockSpec((None, tm, f_out), lambda b, i, k: (b, i, 0))

    if fold_weight:
        kernel = _gcn_one_mm_kernel
        in_specs = [adj_spec, feat_spec, bias_spec]
        args = (adj_p, feat_p, bias_p)
    else:
        kernel = _gcn_two_mm_kernel
        w_p = _pad_to(weight.astype(jnp.float32), (f_feat, f_out))
        w_spec = pl.BlockSpec((f_feat, f_out), lambda b, i, k: (0, 0))
        in_specs = [adj_spec, feat_spec, w_spec, bias_spec]
        args = (adj_p, feat_p, w_p, bias_p)

    out_p = pl.pallas_call(
        kernel,
        out_shape=jax.ShapeDtypeStruct((B, n_m, f_out), out_dtype),
        grid_spec=pltpu.PrefetchScalarGridSpec(
            num_scalar_prefetch=0,
            grid=grid,
            in_specs=in_specs,
            out_specs=out_spec,
            scratch_shapes=[pltpu.VMEM((tm, f_feat), jnp.float32)]),
        compiler_params=pltpu.CompilerParams(
            dimension_semantics=("parallel", "parallel", "arbitrary"),
            vmem_limit_bytes=32 * 1024 * 1024),
    )(*args)

    return out_p[:, :N, :Fout]


def xavier_normal(key, fan_in, fan_out, dtype=jnp.float32):
    # nn.init.xavier_normal_: std = sqrt(2 / (fan_in + fan_out))
    std = (2.0 / (fan_in + fan_out)) ** 0.5
    return std * jax.random.normal(key, (fan_in, fan_out), dtype=dtype)


def _reference(x, adj, weight, bias, stream_dtype):
    """Pure-JAX reference mirroring the kernel's numerics (bf16 streams, f32 acc)."""
    def q(a):
        return a.astype(stream_dtype).astype(jnp.float32)
    Fin, Fout = weight.shape
    if Fout < Fin:
        feat = jnp.matmul(x, weight, preferred_element_type=jnp.float32)
        out = jnp.matmul(q(adj), q(feat), preferred_element_type=jnp.float32)
    else:
        tmp = jnp.matmul(q(adj), q(x), preferred_element_type=jnp.float32)
        out = jnp.matmul(tmp, weight, preferred_element_type=jnp.float32)
    if bias is not None:
        out = out + bias
    return out.astype(x.dtype)


if __name__ == "__main__":
    key = jax.random.PRNGKey(0)

    # --- Test 1: module defaults (bias=False), Fin < Fout -> two-matmul path.
    B, N, Fin, Fout = 2, 16, 8, 16
    k_x, k_adj, k_w, key = jax.random.split(key, 4)
    x = jax.random.normal(k_x, (B, N, Fin), dtype=jnp.float32)
    adj = jax.nn.softmax(jax.random.normal(k_adj, (B, N, N), dtype=jnp.float32),
                         axis=-1)
    weight = xavier_normal(k_w, Fin, Fout)

    out = jax.block_until_ready(graph_convolution(x, adj, weight))
    ref = _reference(x, adj, weight, None, jnp.bfloat16)
    assert out.shape == (B, N, Fout)
    assert jnp.allclose(out, ref, atol=1e-2, rtol=1e-2), \
        float(jnp.max(jnp.abs(out - ref)))

    # --- Test 2: bias=True, Fout < Fin -> weight-folded (single matmul) path.
    Fin2, Fout2 = 32, 8
    k_x2, k_adj2, k_w2, k_b2 = jax.random.split(key, 4)
    x2 = jax.random.normal(k_x2, (B, N, Fin2), dtype=jnp.float32)
    adj2 = jax.nn.softmax(jax.random.normal(k_adj2, (B, N, N), dtype=jnp.float32),
                          axis=-1)
    weight2 = xavier_normal(k_w2, Fin2, Fout2)
    bias2 = 0.1 * jax.random.normal(k_b2, (Fout2,), dtype=jnp.float32)

    out2 = jax.block_until_ready(graph_convolution(x2, adj2, weight2, bias2))
    ref2 = _reference(x2, adj2, weight2, bias2, jnp.bfloat16)
    assert out2.shape == (B, N, Fout2)
    assert jnp.allclose(out2, ref2, atol=1e-2, rtol=1e-2), \
        float(jnp.max(jnp.abs(out2 - ref2)))

    print("KERNEL_OK")
</pallas_src>

<mosaic_0001>
module attributes {stable_mosaic.version = 11 : i64} {
  func.func @_gcn_two_mm_kernel(%arg0: i32, %arg1: i32, %arg2: i32, %arg3: memref<1x16x16xbf16, #tpu.memory_space<vmem>>, %arg4: memref<1x16x8xbf16, #tpu.memory_space<vmem>>, %arg5: memref<8x128xf32, #tpu.memory_space<vmem>>, %arg6: memref<1x128xf32, #tpu.memory_space<vmem>>, %arg7: memref<1x16x128xf32, #tpu.memory_space<vmem>>, %arg8: memref<16x8xf32, #tpu.memory_space<vmem>>) attributes {dimension_semantics = [#tpu.dimension_semantics<parallel>, #tpu.dimension_semantics<parallel>, #tpu.dimension_semantics<arbitrary>], iteration_bounds = array<i64: 2, 1, 1>, scalar_prefetch = 0 : i64, scratch_operands = 1 : i64, tpu.core_type = #tpu.core_type<tc>, window_params = [{transform_indices = @transform_0, window_bounds = array<i64: 1, 16, 16>}, {transform_indices = @transform_1, window_bounds = array<i64: 1, 16, 8>}, {pipeline_mode = #tpu.pipeline_mode<synchronous>, transform_indices = @transform_2, window_bounds = array<i64: 8, 128>}, {pipeline_mode = #tpu.pipeline_mode<synchronous>, transform_indices = @transform_3, window_bounds = array<i64: 1, 128>}, {transform_indices = @transform_4, window_bounds = array<i64: 1, 16, 128>}]} {
    %c0_i32 = arith.constant 0 : i32
    %0 = arith.cmpi eq, %arg2, %c0_i32 : i32
    %1 = arith.extui %0 : i1 to i32
    %c0_i32_0 = arith.constant 0 : i32
    %2 = arith.cmpi ne, %1, %c0_i32_0 : i32
    scf.if %2 {
      %cst_12 = arith.constant 0.000000e+00 : f32
      %14 = vector.broadcast %cst_12 : f32 to vector<16x8xf32>
      %c0_13 = arith.constant 0 : index
      %c0_14 = arith.constant 0 : index
      %15 = vector.load %arg8[%c0_13, %c0_14] : memref<16x8xf32, #tpu.memory_space<vmem>>, vector<16x8xf32>
      tpu.vector_store %arg8[%c0_13, %c0_14], %14 {strides = array<i32>} : memref<16x8xf32, #tpu.memory_space<vmem>>, vector<16x8xf32>,
    } else {
    }
    %c0 = arith.constant 0 : index
    %c0_1 = arith.constant 0 : index
    %3 = vector.load %arg8[%c0, %c0_1] : memref<16x8xf32, #tpu.memory_space<vmem>>, vector<16x8xf32>
    %c0_2 = arith.constant 0 : index
    %c0_3 = arith.constant 0 : index
    %c0_4 = arith.constant 0 : index
    %4 = vector.load %arg3[%c0_2, %c0_3, %c0_4] : memref<1x16x16xbf16, #tpu.memory_space<vmem>>, vector<1x16x16xbf16>
    %5 = vector.shape_cast %4 : vector<1x16x16xbf16> to vector<16x16xbf16>
    %c0_5 = arith.constant 0 : index
    %c0_6 = arith.constant 0 : index
    %c0_7 = arith.constant 0 : index
    %6 = vector.load %arg4[%c0_5, %c0_6, %c0_7] : memref<1x16x8xbf16, #tpu.memory_space<vmem>>, vector<1x16x8xbf16>
    %7 = vector.shape_cast %6 : vector<1x16x8xbf16> to vector<16x8xbf16>
    %cst = arith.constant dense<0.000000e+00> : vector<16x8xf32>
    %8 = tpu.matmul %5, %7, %cst {dimension_numbers = #tpu.dot_dimension_numbers<[1], [0], [0], [1], [0, 0, 1, 1], [], []>} : vector<16x16xbf16>, vector<16x8xbf16>, vector<16x8xf32> -> vector<16x8xf32>
    %9 = arith.addf %3, %8 : vector<16x8xf32>
    %c0_8 = arith.constant 0 : index
    %c0_9 = arith.constant 0 : index
    %10 = vector.load %arg8[%c0_8, %c0_9] : memref<16x8xf32, #tpu.memory_space<vmem>>, vector<16x8xf32>
    tpu.vector_store %arg8[%c0_8, %c0_9], %9 {strides = array<i32>} : memref<16x8xf32, #tpu.memory_space<vmem>>, vector<16x8xf32>,
    %c0_i32_10 = arith.constant 0 : i32
    %11 = arith.cmpi eq, %arg2, %c0_i32_10 : i32
    %12 = arith.extui %11 : i1 to i32
    %c0_i32_11 = arith.constant 0 : i32
    %13 = arith.cmpi ne, %12, %c0_i32_11 : i32
    scf.if %13 {
      %c0_12 = arith.constant 0 : index
      %c0_13 = arith.constant 0 : index
      %14 = vector.load %arg8[%c0_12, %c0_13] : memref<16x8xf32, #tpu.memory_space<vmem>>, vector<16x8xf32>
      %c0_14 = arith.constant 0 : index
      %c0_15 = arith.constant 0 : index
      %15 = vector.load %arg5[%c0_14, %c0_15] : memref<8x128xf32, #tpu.memory_space<vmem>>, vector<8x128xf32>
      %cst_16 = arith.constant dense<0.000000e+00> : vector<16x128xf32>
      %16 = tpu.matmul %14, %15, %cst_16 {dimension_numbers = #tpu.dot_dimension_numbers<[1], [0], [0], [1], [0, 0, 1, 1], [], []>} : vector<16x8xf32>, vector<8x128xf32>, vector<16x128xf32> -> vector<16x128xf32>
      %c0_17 = arith.constant 0 : index
      %c0_18 = arith.constant 0 : index
      %17 = vector.load %arg6[%c0_17, %c0_18] : memref<1x128xf32, #tpu.memory_space<vmem>>, vector<1x128xf32>
      %18 = vector.broadcast %17 : vector<1x128xf32> to vector<16x128xf32>
      %19 = arith.addf %16, %18 : vector<16x128xf32>
      %c0_19 = arith.constant 0 : index
      %c0_20 = arith.constant 0 : index
      %c0_21 = arith.constant 0 : index
      %20 = vector.load %arg7[%c0_19, %c0_20, %c0_21] : memref<1x16x128xf32, #tpu.memory_space<vmem>>, vector<1x16x128xf32>
      %21 = vector.shape_cast %20 : vector<1x16x128xf32> to vector<16x128xf32>
      %22 = vector.shape_cast %19 : vector<16x128xf32> to vector<1x16x128xf32>
      tpu.vector_store %arg7[%c0_19, %c0_20, %c0_21], %22 {strides = array<i32>} : memref<1x16x128xf32, #tpu.memory_space<vmem>>, vector<1x16x128xf32>,
    } else {
    }
    return
  }
  func.func @transform_0(%arg0: i32, %arg1: i32, %arg2: i32) -> (i32, i32, i32) {
    %c0_i32 = arith.constant 0 : i32
    return %arg0, %arg1, %arg2 : i32, i32, i32
  }
  func.func @transform_1(%arg0: i32, %arg1: i32, %arg2: i32) -> (i32, i32, i32) {
    %c0_i32 = arith.constant 0 : i32
    %c0_i32_0 = arith.constant 0 : i32
    return %arg0, %arg2, %c0_i32 : i32, i32, i32
  }
  func.func @transform_2(%arg0: i32, %arg1: i32, %arg2: i32) -> (i32, i32) {
    %c0_i32 = arith.constant 0 : i32
    %c0_i32_0 = arith.constant 0 : i32
    %c0_i32_1 = arith.constant 0 : i32
    return %c0_i32, %c0_i32_0 : i32, i32
  }
  func.func @transform_3(%arg0: i32, %arg1: i32, %arg2: i32) -> (i32, i32) {
    %c0_i32 = arith.constant 0 : i32
    %c0_i32_0 = arith.constant 0 : i32
    %c0_i32_1 = arith.constant 0 : i32
    return %c0_i32, %c0_i32_0 : i32, i32
  }
  func.func @transform_4(%arg0: i32, %arg1: i32, %arg2: i32) -> (i32, i32, i32) {
    %c0_i32 = arith.constant 0 : i32
    %c0_i32_0 = arith.constant 0 : i32
    return %arg0, %arg1, %c0_i32 : i32, i32, i32
  }
}

</mosaic_0001>

<llo_original>
// kernel: graph_convolution.1
$region0: #{graph_convolution.1}
  #allocation0 [shape = 'u32[]', space=smem, size = 0x4, offset = 0x4, fixed_abs, tag = 'smem constant byte address 0x4 - core index']
  #allocation1 [shape = 'u32[144,128]{1,0:T(1,128)}', space=vmem, size = 0x12000, scoped, tag = 'internal scratch']
  #allocation2 [shape = 'f32[16,8]{1,0:T(8,128)}', space=vmem, size = 0x2000, scoped, tag = 'scratch operand']
  %s0 = inlined_call_operand.vmem [shape: bf16[2,16,16], index: 0, kind: input, shape index: {}]
  %s1 = inlined_call_operand.vmem [shape: bf16[2,16,8], index: 1, kind: input, shape index: {}]
  %s2 = inlined_call_operand.vmem [shape: f32[8,128], index: 2, kind: input, shape index: {}]
  %s3 = inlined_call_operand.vmem [shape: f32[1,128], index: 3, kind: input, shape index: {}]
  %s4 = inlined_call_operand.hbm [shape: f32[2,16,128], index: 4, kind: output, shape index: {}]
  %s5 = sld [smem:[#allocation0]]
  $region57: #{graph_convolution.1} parent=0
    _
  %s7 = ssub.s32 1, %s5
  %s8 = scalar_select 0, %s7, %s5
  $region1: #{graph_convolution.1} parent=0
    #allocation3 [shape = 'u8[16384]{0}', space=vmem, size = 0x4000, scoped, tag = 'output window, operand 0']
    #allocation4 [shape = 's32[2]{0}', space=sflag, size = 0x8, scoped, tag = 'scoped memory for graph_convolution.1']
    %9 = vsyncpa [#allocation4], 0
    %s10 = scalar_lea.sflag [#allocation4], 1
    %11 = vsyncpa %s10, 0
    loop: start=0, step=1, limit=4
    $region2: #{graph_convolution.1} parent=1 // loop_pre_header
      _
    $region3: #{graph_convolution.1} parent=1 // loop_header
      %s13 = sphi 0, %s17
      %p14 = scmp.ge.s32.totalorder %s13, 4
      %s20 = sphi 0, %s39
      %s21 = sphi 0, %s35
      %s22 = sphi 0, %s31
      %s23 = sphi 0, %s20
      %s24 = sphi 0, %s21
      %s25 = sphi 0, %s22
      %s26 = sphi 0, %s23
      %s27 = sphi 0, %s24
      %s28 = sphi 0, %s25
      %s46 = sphi 0, %s48
      %s49 = sphi 0, %s46
      %s50 = sphi 0, %s49
      %s66 = sphi 0, %s50
      %s74 = sphi 0, %s76
      %s77 = sphi 0, %s74
      %s78 = sphi 0, %s77
      %s94 = sphi 0, %s78
      %s98 = sphi 0, %s98
      %s100 = sphi 0, %s98
      %s101 = sphi 0, %s100
      %s115 = sphi 0, %s101
      %s119 = sphi 0, %s119
      %s121 = sphi 0, %s119
      %s122 = sphi 0, %s121
      %s136 = sphi 0, %s122
      %s144 = sphi 0, %s146
      %s147 = sphi 0, %s144
      %s148 = sphi 0, %s147
      %s164 = sphi 0, %s148
    $region4: #{graph_convolution.1} parent=1 // loop_header_branch
      %16 = sbr.rel (%p14) target = $region8
    $region5: #{graph_convolution.1} parent=1 // loop_body
      %s18 = ssub.s32 %s13, 1
      %s19 = ssub.s32 %s13, 2
      %s29 = sadd.s32 1, %s22
      %p30 = scmp.ge.s32.totalorder %s29, 1
      %s31 = scalar_select %p30, 0, %s29
      %s32 = sadd.s32 1, %s21
      %s33 = scalar_select %p30, %s32, %s21
      %p34 = scmp.ge.s32.totalorder %s33, 1
      %s35 = scalar_select %p34, 0, %s33
      %s36 = sadd.s32 1, %s20
      %s37 = scalar_select %p34, %s36, %s20
      %p38 = scmp.ge.s32.totalorder %s37, 2
      %s39 = scalar_select %p38, 0, %s37
      %s40 = ssub.s32 %s20, %s39
      %s41 = ssub.s32 %s21, %s35
      %s42 = sor.u32 %s40, %s41
      %s43 = ssub.s32 %s22, %s31
      %s44 = sor.u32 %s42, %s43
      %p45 = scmp.eq.s32.totalorder %s44, 0
      %s47 = sadd.s32 %s46, 1
      %s48 = scalar_select %p45, %s46, %s47
      %p51 = pneg %p45
      %p52 = scmp.eq.s32.totalorder %s13, 1
      %p53 = por %p51, %p52
      %p54 = scmp.ne.s32.totalorder %s46, %s49
      %p55 = scmp.eq.s32.totalorder %s13, 0
      %p56 = por %p54, %p55
      %p57 = scmp.ne.s32.totalorder %s46, %s49
      %p58 = scmp.eq.s32.totalorder %s18, 1
      %p59 = por %p57, %p58
      %p60 = scmp.ne.s32.totalorder %s49, %s50
      %p61 = scmp.eq.s32.totalorder %s18, 0
      %p62 = por %p60, %p61
      %p63 = scmp.ne.s32.totalorder %s49, %s50
      %p64 = scmp.eq.s32.totalorder %s19, 1
      %p65 = por %p63, %p64
      %p67 = scmp.ne.s32.totalorder %s50, %s66
      %p68 = scmp.eq.s32.totalorder %s19, 0
      %p69 = por %p67, %p68
      %s70 = ssub.s32 %s20, %s39
      %s71 = ssub.s32 %s22, %s31
      %s72 = sor.u32 %s70, %s71
      %p73 = scmp.eq.s32.totalorder %s72, 0
      %s75 = sadd.s32 %s74, 1
      %s76 = scalar_select %p73, %s74, %s75
      %p79 = pneg %p73
      %p80 = scmp.eq.s32.totalorder %s13, 1
      %p81 = por %p79, %p80
      %p82 = scmp.ne.s32.totalorder %s74, %s77
      %p83 = scmp.eq.s32.totalorder %s13, 0
      %p84 = por %p82, %p83
      %p85 = scmp.ne.s32.totalorder %s74, %s77
      %p86 = scmp.eq.s32.totalorder %s18, 1
      %p87 = por %p85, %p86
      %p88 = scmp.ne.s32.totalorder %s77, %s78
      %p89 = scmp.eq.s32.totalorder %s18, 0
      %p90 = por %p88, %p89
      %p91 = scmp.ne.s32.totalorder %s77, %s78
      %p92 = scmp.eq.s32.totalorder %s19, 1
      %p93 = por %p91, %p92
      %p95 = scmp.ne.s32.totalorder %s78, %s94
      %p96 = scmp.eq.s32.totalorder %s19, 0
      %p97 = por %p95, %p96
      %s99 = sadd.s32 %s98, 1
      %p102 = scmp.eq.s32.totalorder %s13, 1
      %p103 = scmp.ne.s32.totalorder %s98, %s100
      %p104 = scmp.eq.s32.totalorder %s13, 0
      %p105 = por %p103, %p104
      %p106 = scmp.ne.s32.totalorder %s98, %s100
      %p107 = scmp.eq.s32.totalorder %s18, 1
      %p108 = por %p106, %p107
      %p109 = scmp.ne.s32.totalorder %s100, %s101
      %p110 = scmp.eq.s32.totalorder %s18, 0
      %p111 = por %p109, %p110
      %p112 = scmp.ne.s32.totalorder %s100, %s101
      %p113 = scmp.eq.s32.totalorder %s19, 1
      %p114 = por %p112, %p113
      %p116 = scmp.ne.s32.totalorder %s101, %s115
      %p117 = scmp.eq.s32.totalorder %s19, 0
      %p118 = por %p116, %p117
      %s120 = sadd.s32 %s119, 1
      %p123 = scmp.eq.s32.totalorder %s13, 1
      %p124 = scmp.ne.s32.totalorder %s119, %s121
      %p125 = scmp.eq.s32.totalorder %s13, 0
      %p126 = por %p124, %p125
      %p127 = scmp.ne.s32.totalorder %s119, %s121
      %p128 = scmp.eq.s32.totalorder %s18, 1
      %p129 = por %p127, %p128
      %p130 = scmp.ne.s32.totalorder %s121, %s122
      %p131 = scmp.eq.s32.totalorder %s18, 0
      %p132 = por %p130, %p131
      %p133 = scmp.ne.s32.totalorder %s121, %s122
      %p134 = scmp.eq.s32.totalorder %s19, 1
      %p135 = por %p133, %p134
      %p137 = scmp.ne.s32.totalorder %s122, %s136
      %p138 = scmp.eq.s32.totalorder %s19, 0
      %p139 = por %p137, %p138
      %s140 = ssub.s32 %s20, %s39
      %s141 = ssub.s32 %s21, %s35
      %s142 = sor.u32 %s140, %s141
      %p143 = scmp.eq.s32.totalorder %s142, 0
      %s145 = sadd.s32 %s144, 1
      %s146 = scalar_select %p143, %s144, %s145
      %p149 = pneg %p143
      %p150 = scmp.eq.s32.totalorder %s13, 1
      %p151 = por %p149, %p150
      %p152 = scmp.ne.s32.totalorder %s144, %s147
      %p153 = scmp.eq.s32.totalorder %s13, 0
      %p154 = por %p152, %p153
      %p155 = scmp.ne.s32.totalorder %s144, %s147
      %p156 = scmp.eq.s32.totalorder %s18, 1
      %p157 = por %p155, %p156
      %p158 = scmp.ne.s32.totalorder %s147, %s148
      %p159 = scmp.eq.s32.totalorder %s18, 0
      %p160 = por %p158, %p159
      %p161 = scmp.ne.s32.totalorder %s147, %s148
      %p162 = scmp.eq.s32.totalorder %s19, 1
      %p163 = por %p161, %p162
      %p165 = scmp.ne.s32.totalorder %s148, %s164
      %p166 = scmp.eq.s32.totalorder %s19, 0
      %p167 = por %p165, %p166
      %p168 = scmp.le.s32.totalorder 1, %s13
      %p169 = scmp.lt.s32.totalorder %s13, 3
      %p170 = pnand %p168, %p169
      %p171 = pneg %p170
      // Predicated region
      $region9: #{graph_convolution.1} parent=5 // pred_check
        _
      $region10: #{graph_convolution.1} parent=5 // pred_check_branch
        %173 = sbr.rel (%p170) target = $region12
      $region11: #{graph_convolution.1} parent=5 // pred_region
        %s174 = ssub.s32 %s13, 1
        // Predicated region
        $region13: #{graph_convolution.1} parent=11 // pred_check
          %p175 = pneg %p111
        $region14: #{graph_convolution.1} parent=11 // pred_check_branch
          %177 = sbr.rel (%p175) target = $region16
        $region15: #{graph_convolution.1} parent=11 // pred_region
          _
        $region16: #{graph_convolution.1} parent=11 // pred_fallthru
          _
        // Predicated region
        $region17: #{graph_convolution.1} parent=11 // pred_check
          %p178 = pneg %p132
        $region18: #{graph_convolution.1} parent=11 // pred_check_branch
          %180 = sbr.rel (%p178) target = $region20
        $region19: #{graph_convolution.1} parent=11 // pred_region
          _
        $region20: #{graph_convolution.1} parent=11 // pred_fallthru
          _
      $region12: #{graph_convolution.1} parent=5 // pred_fallthru
        _
      %p181 = scmp.lt.s32.totalorder %s13, 2
      // Predicated region
      $region21: #{graph_convolution.1} parent=5 // pred_check
        %p182 = pneg %p181
      $region22: #{graph_convolution.1} parent=5 // pred_check_branch
        %184 = sbr.rel (%p182) target = $region24
      $region23: #{graph_convolution.1} parent=5 // pred_region
        // Predicated region
        $region25: #{graph_convolution.1} parent=23 // pred_check
          %p185 = pneg %p56
        $region26: #{graph_convolution.1} parent=23 // pred_check_branch
          %187 = sbr.rel (%p185) target = $region28
        $region27: #{graph_convolution.1} parent=23 // pred_region
          %s188 = smul.u32 2, %s21
          %p189 = scmp.lt.s32.totalorder %s20, 1
          %s190 = scalar_select %p189, %s20, 1
          %p191 = scmp.lt.s32.totalorder %s188, 1
          %s192 = scalar_select %p191, %s188, 1
          %p193 = scmp.lt.s32.totalorder %s22, 0
          %s194 = scalar_select %p193, %s22, 0
          %s195 = sadd.s32 %s194, %s192
          %s196 = smul.addr %s190, 2
          %s197 = sadd.s32 %s195, %s196
          %s198 = smul.addr %s197, 4
          %s199 = scalar_lea.vmem %s0, %s198
          %s200 = smul.u32 2, %s21
        $region28: #{graph_convolution.1} parent=23 // pred_fallthru
          _
        // Predicated region
        $region29: #{graph_convolution.1} parent=23 // pred_check
          %p201 = pneg %p84
        $region30: #{graph_convolution.1} parent=23 // pred_check_branch
          %203 = sbr.rel (%p201) target = $region32
        $region31: #{graph_convolution.1} parent=23 // pred_region
          %s204 = smul.u32 2, %s22
          %p205 = scmp.lt.s32.totalorder %s20, 1
          %s206 = scalar_select %p205, %s20, 1
          %p207 = scmp.lt.s32.totalorder %s204, 1
          %s208 = scalar_select %p207, %s204, 1
          %s209 = smul.addr %s206, 2
          %s210 = sadd.s32 %s208, %s209
          %s211 = smul.addr %s210, 4
          %s212 = scalar_lea.vmem %s1, %s211
          %s213 = smul.u32 2, %s22
        $region32: #{graph_convolution.1} parent=23 // pred_fallthru
          _
      $region24: #{graph_convolution.1} parent=5 // pred_fallthru
        _
      %p214 = scmp.le.s32.totalorder 1, %s13
      %p215 = scmp.lt.s32.totalorder %s13, 3
      %p216 = pnand %p214, %p215
      %p217 = pneg %p216
      // Predicated region
      $region33: #{graph_convolution.1} parent=5 // pred_check
        _
      $region34: #{graph_convolution.1} parent=5 // pred_check_branch
        %219 = sbr.rel (%p216) target = $region36
      $region35: #{graph_convolution.1} parent=5 // pred_region
        %s220 = ssub.s32 %s13, 1
        %s221 = smul.u32 2, %s24
        %p222 = scmp.lt.s32.totalorder %s23, 1
        %s223 = scalar_select %p222, %s23, 1
        %p224 = scmp.lt.s32.totalorder %s221, 1
        %s225 = scalar_select %p224, %s221, 1
        %p226 = scmp.lt.s32.totalorder %s25, 0
        %s227 = scalar_select %p226, %s25, 0
        %s228 = sadd.s32 %s227, %s225
        %s229 = smul.addr %s223, 2
        %s230 = sadd.s32 %s228, %s229
        %s231 = smul.addr %s230, 4
        %s232 = scalar_lea.vmem %s0, %s231
        %p233 = pneg %p62
        %p234 = pneg %p59
        %s235 = smul.u32 2, %s25
        %p236 = scmp.lt.s32.totalorder %s23, 1
        %s237 = scalar_select %p236, %s23, 1
        %p238 = scmp.lt.s32.totalorder %s235, 1
        %s239 = scalar_select %p238, %s235, 1
        %s240 = smul.addr %s237, 2
        %s241 = sadd.s32 %s239, %s240
        %s242 = smul.addr %s241, 4
        %s243 = scalar_lea.vmem %s1, %s242
        %p244 = pneg %p90
        %p245 = pneg %p87
        %p246 = pneg %p111
        %p247 = pneg %p108
        %p248 = pneg %p132
        %p249 = pneg %p129
        %p250 = pneg %p160
        %p251 = pneg %p157
        %s252 = sand.u32 %s147, 1
        %s253 = scalar_lea.sflag [#allocation4], %s252
        %s254 = sand.u32 %s147, 1
        %s255 = smul.addr %s254, 16
        %s256 = scalar_lea.vmem [#allocation3], %s255
        %s257 = smul.u32 2, %s24
        %p258 = scmp.lt.s32.totalorder %s23, 1
        %s259 = scalar_select %p258, %s23, 1
        %p260 = scmp.lt.s32.totalorder %s257, 1
        %s261 = scalar_select %p260, %s257, 1
        %p262 = scmp.lt.s32.totalorder %s25, 0
        %s263 = scalar_select %p262, %s25, 0
        %s264 = sadd.s32 %s263, %s261
        %s265 = smul.addr %s259, 2
        %s266 = sadd.s32 %s264, %s265
        %s267 = smul.addr %s266, 4
        %s268 = scalar_lea.vmem %s0, %s267
        %s269 = smul.u32 2, %s24
        %s270 = smul.u32 2, %s25
        %p271 = scmp.lt.s32.totalorder %s23, 1
        %s272 = scalar_select %p271, %s23, 1
        %p273 = scmp.lt.s32.totalorder %s270, 1
        %s274 = scalar_select %p273, %s270, 1
        %s275 = smul.addr %s272, 2
        %s276 = sadd.s32 %s274, %s275
        %s277 = smul.addr %s276, 4
        %s278 = scalar_lea.vmem %s1, %s277
        %s279 = smul.u32 2, %s25
        %s280 = smul.u32 2, %s24
        %p282 = scmp.eq.s32.totalorder %s25, 0
        // Predicated region
        $region37: #{graph_convolution.1} parent=35 // pred_check
          %p283 = pneg %p282
        $region38: #{graph_convolution.1} parent=35 // pred_check_branch
          %285 = sbr.rel (%p283) target = $region40
        $region39: #{graph_convolution.1} parent=35 // pred_region
          %vm286 = vcmask 64512
          %287 = vst.msk [vmem:[#allocation2] sm:$0xff] %vm286, 0.0
          %288 = vst.msk [vmem:[#allocation2 + $0x8] sm:$0xff] %vm286, 0.0
        $region40: #{graph_convolution.1} parent=35 // pred_fallthru
          _
        %v289 = vld [vmem:[#allocation2] sm:$0xff]
        %v290 = vld [vmem:[#allocation2 + $0x8] sm:$0xff]
        %v291 = vld [vmem:[%s268] sm:$0xf]
        %v292 = vld [vmem:[%s268 + $0x4] sm:$0xf]
        %v293 = vld [vmem:[%s278] sm:$0xf]
        %v294 = vld [vmem:[%s278 + $0x4] sm:$0xf]
        %v297 = vunpack.c.l.b16 %v291
        %v298 = vunpack.c.l.b16 %v292
        %v299 = vpack.c.b16 %v298, %v297
        %v302 = vunpack.c.l.b16 %v293
        %v303 = vunpack.c.l.b16 %v294
        %v304 = vpack.c.b16 %v303, %v302
        %vm306 = vcmask 130048
        %v308 = vsel %vm306, %v299, 0
        %310 = vmatprep.subr.bf16.mxu0 0
        %311 = vmatpush1.bf16.msra.mxu0 0
        %312 = vmatprep.subr.bf16.mxu0 0
        %313 = vmatpush1.bf16.msra.mxu0 0
        %314 = vmatprep.subr.bf16.mxu0 0
        %315 = vmatpush1.bf16.msra.mxu0 0
        %316 = vmatprep.subr.bf16.mxu0 0
        %317 = vmatpush1.bf16.msra.mxu0 0
        %318 = vmatprep.subr.bf16.mxu0 0
        %319 = vmatpush1.bf16.msra.mxu0 0
        %320 = vmatprep.subr.bf16.mxu0 0
        %321 = vmatpush1.bf16.msra.mxu0 0
        %322 = vmatprep.subr.bf16.mxu0 0
        %323 = vmatpush1.bf16.msra.mxu0 0
        %324 = vmatprep.subr.bf16.mxu0 0
        %325 = vmatpush1.bf16.msra.mxu0 %v304
        %326 = vmatprep.subr.bf16.mxu0 0
        %327 = vmatpush2.bf16.msra.mxu0 0
        %328 = vmatprep.subr.bf16.mxu0 0
        %329 = vmatpush2.bf16.msra.mxu0 0
        %330 = vmatprep.subr.bf16.mxu0 0
        %331 = vmatpush2.bf16.msra.mxu0 0
        %332 = vmatprep.subr.bf16.mxu0 0
        %333 = vmatpush2.bf16.msra.mxu0 0
        %334 = vmatprep.subr.bf16.mxu0 0
        %335 = vmatpush2.bf16.msra.mxu0 0
        %336 = vmatprep.subr.bf16.mxu0 0
        %337 = vmatpush2.bf16.msra.mxu0 0
        %338 = vmatprep.subr.bf16.mxu0 0
        %339 = vmatpush2.bf16.msra.mxu0 0
        %340 = vmatprep.subr.bf16.mxu0 0
        %341 = vmatpush2.bf16.msra.mxu0 0
        %342 = vmatprep.mubr.bf16.mxu0 0
        %343 = vmatmul.mubr.bf16.gmra.mxu0 %v308
        %v344 = vpop.f32.mrf.mxu0
        %v345 = vadd.f32 0.0, %v344
        %v346 = vpop.f32.mrf.mxu0
        %v347 = vpop.f32.mrf.mxu0
        %v348 = vadd.f32 0.0, %v347
        %v349 = vpop.f32.mrf.mxu0
        %350 = vdwg.mxu0
        %v351 = vadd.f32 %v289, %v345
        %v352 = vadd.f32 %v290, %v348
        %vm353 = vcmask 64512
        %354 = vst.msk [vmem:[#allocation2] sm:$0xff] %vm353, %v351
        %355 = vst.msk [vmem:[#allocation2 + $0x8] sm:$0xff] %vm353, %v352
        // Predicated region
        $region41: #{graph_convolution.1} parent=35 // pred_check
          %p356 = pneg %p282
        $region42: #{graph_convolution.1} parent=35 // pred_check_branch
          %358 = sbr.rel (%p356) target = $region44
        $region43: #{graph_convolution.1} parent=35 // pred_region
          %v359 = vld [vmem:[#allocation2] sm:$0xff]
          %v360 = vld [vmem:[#allocation2 + $0x8] sm:$0xff]
          %v361 = vld [vmem:[%s2] sm:$0xff]
          %v362 = vld [vmem:[%s3] sm:$0x1]
          %v364 = vlaneseq
          %v365 = vshrl.u32 %v364, 7
          %v366 = vsub.s32 0, %v365
          %v367 = vrot.slane %v362, %v366
          %v370 = vsel %vm353, %v359, 0
          %v373 = vsel %vm353, %v360, 0
          %375 = vmatprep.subr.mxu0 0.0
          %376 = vmatpush1.msra.mxu0 0.0
          %377 = vmatprep.subr.mxu0 0.0
          %378 = vmatpush1.msra.mxu0 0.0
          %379 = vmatprep.subr.mxu0 0.0
          %380 = vmatpush1.msra.mxu0 0.0
          %381 = vmatprep.subr.mxu0 0.0
          %382 = vmatpush1.msra.mxu0 0.0
          %383 = vmatprep.subr.mxu0 0.0
          %384 = vmatpush1.msra.mxu0 0.0
          %385 = vmatprep.subr.mxu0 0.0
          %386 = vmatpush1.msra.mxu0 0.0
          %387 = vmatprep.subr.mxu0 0.0
          %388 = vmatpush1.msra.mxu0 0.0
          %389 = vmatprep.subr.mxu0 0.0
          %390 = vmatpush1.msra.mxu0 0.0
          %391 = vmatprep.subr.mxu0 0.0
          %392 = vmatpush1.msra.mxu0 0.0
          %393 = vmatprep.subr.mxu0 0.0
          %394 = vmatpush1.msra.mxu0 0.0
          %395 = vmatprep.subr.mxu0 0.0
          %396 = vmatpush1.msra.mxu0 0.0
          %397 = vmatprep.subr.mxu0 0.0
          %398 = vmatpush1.msra.mxu0 0.0
          %399 = vmatprep.subr.mxu0 0.0
          %400 = vmatpush1.msra.mxu0 0.0
          %401 = vmatprep.subr.mxu0 0.0
          %402 = vmatpush1.msra.mxu0 0.0
          %403 = vmatprep.subr.mxu0 0.0
          %404 = vmatpush1.msra.mxu0 0.0
          %405 = vmatprep.subr.mxu0 0.0
          %406 = vmatpush1.msra.mxu0 %v361
          %407 = vmatprep.subr.mxu0 0.0
          %408 = vmatpush2.msra.mxu0 0.0
          %409 = vmatprep.subr.mxu0 0.0
          %410 = vmatpush2.msra.mxu0 0.0
          %411 = vmatprep.subr.mxu0 0.0
          %412 = vmatpush2.msra.mxu0 0.0
          %413 = vmatprep.subr.mxu0 0.0
          %414 = vmatpush2.msra.mxu0 0.0
          %415 = vmatprep.subr.mxu0 0.0
          %416 = vmatpush2.msra.mxu0 0.0
          %417 = vmatprep.subr.mxu0 0.0
          %418 = vmatpush2.msra.mxu0 0.0
          %419 = vmatprep.subr.mxu0 0.0
          %420 = vmatpush2.msra.mxu0 0.0
          %421 = vmatprep.subr.mxu0 0.0
          %422 = vmatpush2.msra.mxu0 0.0
          %423 = vmatprep.subr.mxu0 0.0
          %424 = vmatpush2.msra.mxu0 0.0
          %425 = vmatprep.subr.mxu0 0.0
          %426 = vmatpush2.msra.mxu0 0.0
          %427 = vmatprep.subr.mxu0 0.0
          %428 = vmatpush2.msra.mxu0 0.0
          %429 = vmatprep.subr.mxu0 0.0
          %430 = vmatpush2.msra.mxu0 0.0
          %431 = vmatprep.subr.mxu0 0.0
          %432 = vmatpush2.msra.mxu0 0.0
          %433 = vmatprep.subr.mxu0 0.0
          %434 = vmatpush2.msra.mxu0 0.0
          %435 = vmatprep.subr.mxu0 0.0
          %436 = vmatpush2.msra.mxu0 0.0
          %437 = vmatprep.subr.mxu0 0.0
          %438 = vmatpush2.msra.mxu0 0.0
          %439 = vmatprep.mubr.f32.mxu0 0.0
          %440 = vmatmul.mubr.f32.gmra.mxu0 %v370
          %v441 = vpop.f32.mrf.mxu0
          %v442 = vadd.f32 %v367, %v441
          %v443 = vpop.f32.mrf.mxu0
          %444 = vmatprep.mubr.f32.mxu0 0.0
          %445 = vmatmul.mubr.f32.gmra.mxu0 %v373
          %v446 = vpop.f32.mrf.mxu0
          %v447 = vadd.f32 %v367, %v446
          %v448 = vpop.f32.mrf.mxu0
          %449 = vdwg.mxu0
          %450 = vst [vmem:[%s256] sm:$0xff] %v442
          %451 = vst [vmem:[%s256 + $0x8] sm:$0xff] %v447
        $region44: #{graph_convolution.1} parent=35 // pred_fallthru
          _
        %s452 = sand.u32 %s147, 1
        %s453 = scalar_lea.sflag [#allocation4], %s452
        %s454 = sand.u32 %s147, 1
        %s455 = smul.addr %s454, 16
        %s456 = scalar_lea.vmem [#allocation3], %s455
        // Predicated region
        $region45: #{graph_convolution.1} parent=35 // pred_check
          %p457 = pneg %p157
        $region46: #{graph_convolution.1} parent=35 // pred_check_branch
          %459 = sbr.rel (%p457) target = $region48
        $region47: #{graph_convolution.1} parent=35 // pred_region
          %s460 = smul.u32 2, %s24
          %s462 = ssub.s32 256, 256
          %463 = vsyncadd %s453, %s462
          %s464 = smul.addr %s23, 2
          %s465 = sadd.s32 %s460, %s464
          %s466 = smul.addr %s465, 128
          %s467 = scalar_lea.hbm %s4, %s466
          %s468 = sshll.u32 %s456, 4
          %s469 = int_to_ptr.vmem [resolvable:$true] %s468
          %474 = dma.vmem_to_hbm [thread:$0]  %s469, 256, %s467, %s453, 128, 128, 8
        $region48: #{graph_convolution.1} parent=35 // pred_fallthru
          _
      $region36: #{graph_convolution.1} parent=5 // pred_fallthru
        _
      %p475 = scmp.le.s32.totalorder 2, %s13
      // Predicated region
      $region49: #{graph_convolution.1} parent=5 // pred_check
        %p476 = pneg %p475
      $region50: #{graph_convolution.1} parent=5 // pred_check_branch
        %478 = sbr.rel (%p476) target = $region52
      $region51: #{graph_convolution.1} parent=5 // pred_region
        %s479 = ssub.s32 %s13, 2
        // Predicated region
        $region53: #{graph_convolution.1} parent=51 // pred_check
          %p480 = pneg %p163
        $region54: #{graph_convolution.1} parent=51 // pred_check_branch
          %482 = sbr.rel (%p480) target = $region56
        $region55: #{graph_convolution.1} parent=51 // pred_region
          %s483 = sand.u32 %s148, 1
          %s484 = scalar_lea.sflag [#allocation4], %s483
          %s485 = sand.u32 %s148, 1
          %s486 = smul.addr %s485, 16
          %s487 = scalar_lea.vmem [#allocation3], %s486
          %488 = dma.done %s484, 256
        $region56: #{graph_convolution.1} parent=51 // pred_fallthru
          _
      $region52: #{graph_convolution.1} parent=5 // pred_fallthru
        _
    $region6: #{graph_convolution.1} parent=1 // loop_footer
      %s17 = sadd.s32 1, %s13
    $region7: #{graph_convolution.1} parent=1 // loop_footer_branch
      %12 = sbr.rel target = $region3
    $region8: #{graph_convolution.1} parent=1 // loop_exit
      _
    %489 = vsyncpa [#allocation4], 1
    %s490 = scalar_lea.sflag [#allocation4], 1
    %491 = vsyncpa %s490, 1

</llo_original>
